<compile_context>
chip_gen: v6e
topology: v6e:2x2x1
jax: 0.10.0
libtpu: 0.0.40
codegen_flags: <defaults>
</compile_context>

<pallas_src>
import functools

import jax
import jax.numpy as jnp
from jax.experimental import pallas as pl
from jax.experimental.pallas import tpu as pltpu


def _round_up(x, m):
    return ((x + m - 1) // m) * m


def _round_down(x, m):
    return (x // m) * m


# ----------------------------------------------------------------------------
# Kernels
# ----------------------------------------------------------------------------
def _predictor_kernel(x_ref, w_ref, b_ref, o_ref):
    # x_ref: (TB, F) VMEM (input dtype)   -- one batch tile, streamed
    # w_ref: (1, F)  VMEM (weight dtype)  -- constant block index -> resident
    # b_ref: (1,)    SMEM f32             -- scalar bias
    # o_ref: (TB, 1) VMEM (out dtype)
    x = x_ref[...].astype(jnp.float32)
    w = w_ref[...].astype(jnp.float32)          # broadcasts over TB rows
    # VPU multiply + single XLU cross-lane reduce; scalar bias rides the add.
    s = jnp.sum(x * w, axis=-1, keepdims=True) + b_ref[0]
    o_ref[...] = jnp.tanh(s).astype(o_ref.dtype)


def _predictor_kernel_ftiled(x_ref, w_ref, b_ref, o_ref, acc_ref, *,
                             fea_dim, tf, mask_tail):
    # Feature axis is tiled (grid axis 1, "arbitrary"); f32 accumulator in VMEM.
    k = pl.program_id(1)

    @pl.when(k == 0)
    def _init():
        acc_ref[...] = jnp.zeros_like(acc_ref)

    x = x_ref[...].astype(jnp.float32)
    w = w_ref[...].astype(jnp.float32)
    xw = x * w
    if mask_tail:  # static python bool: only emitted when F % TF != 0
        col = jax.lax.broadcasted_iota(jnp.int32, xw.shape, 1)
        xw = jnp.where(k * tf + col < fea_dim, xw, 0.0)
    acc_ref[...] += jnp.sum(xw, axis=-1, keepdims=True)

    @pl.when(k == pl.num_programs(1) - 1)
    def _finalize():
        o_ref[...] = jnp.tanh(acc_ref[...] + b_ref[0]).astype(o_ref.dtype)


# ----------------------------------------------------------------------------
# Wrapper
# ----------------------------------------------------------------------------
def predictor_forward(img_fea, weight, bias, *, block_rows=None,
                      pipeline_budget_bytes=24 * 1024 * 1024):
    """tanh(img_fea @ weight.T + bias), matching torch Predictor.forward.

    img_fea: (B, fea_dim); weight: (1, fea_dim); bias: (1,). Returns (B, 1).
    """
    B, F = img_fea.shape
    assert weight.shape == (1, F)
    bias = jnp.asarray(bias, jnp.float32).reshape(1)

    out_dtype = jnp.promote_types(img_fea.dtype, weight.dtype)
    x_bytes = jnp.dtype(img_fea.dtype).itemsize
    w_bytes = jnp.dtype(weight.dtype).itemsize
    out_bytes = jnp.dtype(out_dtype).itemsize
    gran = {4: 8, 2: 16, 1: 32}.get(x_bytes, 8)   # sublane granularity for x dtype

    # Per-row, per-buffer VMEM footprint: x row + lane-padded (1 -> 128) out row.
    row_bytes = F * x_bytes + 128 * out_bytes
    tb_full = pipeline_budget_bytes // (2 * row_bytes)
    if block_rows is not None:
        tb_full = int(block_rows)

    cost = pl.CostEstimate(
        flops=2 * B * F,
        transcendentals=B,
        bytes_accessed=B * F * x_bytes + F * w_bytes + B * out_bytes + 4,
    )
    compiler_params_1d = pltpu.CompilerParams(
        dimension_semantics=("parallel",),
        vmem_limit_bytes=48 * 1024 * 1024,
    )

    if tb_full >= gran:
        # -------- common path: whole feature dim resident per tile ----------
        TB = max(gran, _round_down(min(tb_full, _round_up(B, gran)), gran))
        grid = (pl.cdiv(B, TB),)   # ragged last block handled by Pallas masking
        return pl.pallas_call(
            _predictor_kernel,
            out_shape=jax.ShapeDtypeStruct((B, 1), out_dtype),
            grid_spec=pltpu.PrefetchScalarGridSpec(
                num_scalar_prefetch=0,
                grid=grid,
                in_specs=[
                    pl.BlockSpec((TB, F), lambda i: (i, 0)),        # streamed
                    pl.BlockSpec((1, F), lambda i: (0, 0)),         # resident
                    pl.BlockSpec(memory_space=pltpu.MemorySpace.SMEM),
                ],
                out_specs=pl.BlockSpec((TB, 1), lambda i: (i, 0)),
            ),
            compiler_params=compiler_params_1d,
            cost_estimate=cost,
        )(img_fea, weight, bias)

    # -------- very large fea_dim: tile the feature axis too -----------------
    TB = max(gran, _round_down(min(512, _round_up(B, gran)), gran))
    TF = _round_down(pipeline_budget_bytes // (2 * TB * x_bytes), 128)
    TF = max(128, TF)
    TF = min(TF, _round_up(F, 128))
    mask_tail = (F % TF) != 0

    kernel = functools.partial(_predictor_kernel_ftiled,
                               fea_dim=F, tf=TF, mask_tail=mask_tail)
    grid = (pl.cdiv(B, TB), pl.cdiv(F, TF))   # reduction axis last
    return pl.pallas_call(
        kernel,
        out_shape=jax.ShapeDtypeStruct((B, 1), out_dtype),
        grid_spec=pltpu.PrefetchScalarGridSpec(
            num_scalar_prefetch=0,
            grid=grid,
            in_specs=[
                pl.BlockSpec((TB, TF), lambda i, k: (i, k)),
                pl.BlockSpec((1, TF), lambda i, k: (0, k)),
                pl.BlockSpec(memory_space=pltpu.MemorySpace.SMEM),
            ],
            out_specs=pl.BlockSpec((TB, 1), lambda i, k: (i, 0)),
            scratch_shapes=[pltpu.VMEM((TB, 1), jnp.float32)],
        ),
        compiler_params=pltpu.CompilerParams(
            dimension_semantics=("parallel", "arbitrary"),
            vmem_limit_bytes=48 * 1024 * 1024,
        ),
        cost_estimate=cost,
    )(img_fea, weight, bias)


# ----------------------------------------------------------------------------
# Self-test
# ----------------------------------------------------------------------------
def _reference(x, w, b):
    xf = x.astype(jnp.float32)
    wf = w.astype(jnp.float32)
    out = jnp.tanh(jnp.sum(xf * wf[0][None, :], axis=-1, keepdims=True) + b[0])
    return out.astype(jnp.promote_types(x.dtype, w.dtype))


if __name__ == "__main__":
    key = jax.random.PRNGKey(0)
    keys = jax.random.split(key, 12)

    def make_params(kw, kb, fdim, dtype=jnp.float32):
        bound = 1.0 / (fdim ** 0.5)
        w = jax.random.uniform(kw, (1, fdim), jnp.float32, -bound, bound).astype(dtype)
        b = jax.random.uniform(kb, (1,), jnp.float32, -bound, bound)
        return w, b

    # 1) module-natural small shapes (single tile, single grid step)
    B, fea_dim = 8, 32
    x1 = jax.random.normal(keys[0], (B, fea_dim), jnp.float32)
    w1, b1 = make_params(keys[1], keys[2], fea_dim)
    o1 = jax.block_until_ready(predictor_forward(x1, w1, b1))
    assert o1.shape == (B, 1)
    assert jnp.allclose(o1, _reference(x1, w1, b1), atol=1e-5, rtol=1e-4)

    # 2) multi-step grid with ragged last batch block (no wrapper-side pad)
    B2, F2 = 300, 256
    x2 = jax.random.normal(keys[3], (B2, F2), jnp.float32)
    w2, b2 = make_params(keys[4], keys[5], F2)
    o2 = jax.block_until_ready(predictor_forward(x2, w2, b2, block_rows=128))
    assert o2.shape == (B2, 1)
    assert jnp.allclose(o2, _reference(x2, w2, b2), atol=1e-5, rtol=1e-4)

    # 3) bf16 input stays bf16 in HBM (upcast inside the kernel)
    B3, F3 = 64, 128
    x3 = jax.random.normal(keys[6], (B3, F3), jnp.float32).astype(jnp.bfloat16)
    w3, b3 = make_params(keys[7], keys[8], F3)
    o3 = jax.block_until_ready(predictor_forward(x3, w3, b3))
    assert o3.shape == (B3, 1)
    assert jnp.allclose(o3, _reference(x3, w3, b3), atol=1e-5, rtol=1e-4)

    # 4) large-F fallback path (forced via a tiny budget): feature-axis grid,
    #    VMEM accumulator, ragged feature tail masked in-kernel.
    B4, F4 = 48, 300
    x4 = jax.random.normal(keys[9], (B4, F4), jnp.float32)
    w4, b4 = make_params(keys[10], keys[11], F4)
    o4 = jax.block_until_ready(
        predictor_forward(x4, w4, b4, pipeline_budget_bytes=16 * 1024))
    assert o4.shape == (B4, 1)
    assert jnp.allclose(o4, _reference(x4, w4, b4), atol=1e-5, rtol=1e-4)

    print("KERNEL_OK")
</pallas_src>

<mosaic_0001>
module attributes {stable_mosaic.version = 11 : i64} {
  func.func @_predictor_kernel(%arg0: i32, %arg1: memref<8x32xf32, #tpu.memory_space<vmem>>, %arg2: memref<1x32xf32, #tpu.memory_space<vmem>>, %arg3: memref<1xf32, #tpu.memory_space<smem>>, %arg4: memref<8x1xf32, #tpu.memory_space<vmem>>) attributes {dimension_semantics = [#tpu.dimension_semantics<parallel>], iteration_bounds = array<i64: 1>, scalar_prefetch = 0 : i64, scratch_operands = 0 : i64, tpu.core_type = #tpu.core_type<tc>, window_params = [{transform_indices = @transform_0, window_bounds = array<i64: 8, 32>}, {pipeline_mode = #tpu.pipeline_mode<synchronous>, transform_indices = @transform_1, window_bounds = array<i64: 1, 32>}, {transform_indices = @transform_2, window_bounds = array<i64: 1>}, {transform_indices = @transform_3, window_bounds = array<i64: 8, 1>}]} {
    %c0 = arith.constant 0 : index
    %c0_0 = arith.constant 0 : index
    %0 = vector.load %arg1[%c0, %c0_0] : memref<8x32xf32, #tpu.memory_space<vmem>>, vector<8x32xf32>
    %c0_1 = arith.constant 0 : index
    %c0_2 = arith.constant 0 : index
    %1 = vector.load %arg2[%c0_1, %c0_2] : memref<1x32xf32, #tpu.memory_space<vmem>>, vector<1x32xf32>
    %2 = vector.broadcast %1 : vector<1x32xf32> to vector<8x32xf32>
    %3 = arith.mulf %0, %2 : vector<8x32xf32>
    %cst = arith.constant dense<0.000000e+00> : vector<8xf32>
    %4 = vector.multi_reduction <add>, %3, %cst [1] : vector<8x32xf32> to vector<8xf32>
    %5 = vector.shape_cast %4 : vector<8xf32> to vector<8x1xf32>
    %c0_3 = arith.constant 0 : index
    %6 = memref.load %arg3[%c0_3] : memref<1xf32, #tpu.memory_space<smem>>
    %7 = vector.broadcast %6 : f32 to vector<8x1xf32>
    %8 = arith.addf %5, %7 : vector<8x1xf32>
    %9 = math.tanh %8 : vector<8x1xf32>
    %c0_4 = arith.constant 0 : index
    %c0_5 = arith.constant 0 : index
    %10 = vector.load %arg4[%c0_4, %c0_5] : memref<8x1xf32, #tpu.memory_space<vmem>>, vector<8x1xf32>
    tpu.vector_store %arg4[%c0_4, %c0_5], %9 {strides = array<i32>} : memref<8x1xf32, #tpu.memory_space<vmem>>, vector<8x1xf32>,
    return
  }
  func.func @transform_0(%arg0: i32) -> (i32, i32) {
    %c0_i32 = arith.constant 0 : i32
    %c0_i32_0 = arith.constant 0 : i32
    return %arg0, %c0_i32 : i32, i32
  }
  func.func @transform_1(%arg0: i32) -> (i32, i32) {
    %c0_i32 = arith.constant 0 : i32
    %c0_i32_0 = arith.constant 0 : i32
    %c0_i32_1 = arith.constant 0 : i32
    return %c0_i32, %c0_i32_0 : i32, i32
  }
  func.func @transform_2(%arg0: i32) -> i32 {
    %c0_i32 = arith.constant 0 : i32
    %c0_i32_0 = arith.constant 0 : i32
    return %c0_i32 : i32
  }
  func.func @transform_3(%arg0: i32) -> (i32, i32) {
    %c0_i32 = arith.constant 0 : i32
    %c0_i32_0 = arith.constant 0 : i32
    return %arg0, %c0_i32 : i32, i32
  }
}

</mosaic_0001>

<llo_original>
// kernel: tpu_custom_call.1
$region0: #{tpu_custom_call.1}
  #allocation0 [shape = 'u32[]', space=smem, size = 0x4, offset = 0x4, fixed_abs, tag = 'smem constant byte address 0x4 - core index']
  #allocation1 [shape = 'u32[144,128]{1,0:T(1,128)}', space=vmem, size = 0x12000, scoped, tag = 'internal scratch']
  #allocation2 [shape = 'f32[1]{0:T(128)S(6)}', space=smem, size = 0x200, scoped, tag = 'scoped memory for tpu_custom_call.1']
  %s0 = inlined_call_operand.hbm [shape: f32[8,32], index: 0, kind: input, shape index: {}]
  %s1 = inlined_call_operand.vmem [shape: f32[1,32], index: 1, kind: input, shape index: {}]
  %s2 = inlined_call_operand.<no memory space> [shape: f32[1], index: 2, kind: input, shape index: {}]
  %s3 = inlined_call_operand.vmem [shape: f32[8,1], index: 3, kind: output, shape index: {}]
  %s4 = sld [smem:[#allocation0]]
  $region26: #{tpu_custom_call.1} parent=0
    _
  %s6 = ssub.s32 1, %s4
  %s7 = scalar_select 0, %s6, %s4
  %8 = sst [smem:[#allocation2]] %s2
  $region1: #{tpu_custom_call.1} parent=0
    #allocation3 [shape = 'u8[4096]{0}', space=vmem, size = 0x1000, scoped, tag = 'input window, operand 0, single buffered']
    #allocation4 [shape = 's32[1]{0}', space=sflag, size = 0x4, scoped, tag = 'scoped memory for tpu_custom_call.1']
    %9 = vsyncpa [#allocation4], 0
    // Predicated region
    $region2: #{tpu_custom_call.1} parent=1 // pred_check
      _
    $region3: #{tpu_custom_call.1} parent=1 // pred_check_branch
      %11 = sbr.rel (0) target = $region5
    $region4: #{tpu_custom_call.1} parent=1 // pred_region
      %s13 = ssub.s32 128, 128
      %14 = vsyncadd [#allocation4], %s13
      %s16 = sshll.u32 [#allocation3], 4
      %s17 = int_to_ptr.vmem [resolvable:$true] %s16
      %19 = dma.hbm_to_vmem [thread:$0]  %s0, 128, %s17, [#allocation4]
    $region5: #{tpu_custom_call.1} parent=1 // pred_fallthru
      _
    // Predicated region
    $region6: #{tpu_custom_call.1} parent=1 // pred_check
      _
    $region7: #{tpu_custom_call.1} parent=1 // pred_check_branch
      %21 = sbr.rel (0) target = $region9
    $region8: #{tpu_custom_call.1} parent=1 // pred_region
      _
    $region9: #{tpu_custom_call.1} parent=1 // pred_fallthru
      _
    // Predicated region
    $region10: #{tpu_custom_call.1} parent=1 // pred_check
      _
    $region11: #{tpu_custom_call.1} parent=1 // pred_check_branch
      %23 = sbr.rel (0) target = $region13
    $region12: #{tpu_custom_call.1} parent=1 // pred_region
      _
    $region13: #{tpu_custom_call.1} parent=1 // pred_fallthru
      _
    // Predicated region
    $region14: #{tpu_custom_call.1} parent=1 // pred_check
      _
    $region15: #{tpu_custom_call.1} parent=1 // pred_check_branch
      %25 = sbr.rel (0) target = $region17
    $region16: #{tpu_custom_call.1} parent=1 // pred_region
      %26 = dma.done [#allocation4], 128
    $region17: #{tpu_custom_call.1} parent=1 // pred_fallthru
      _
    %v27 = vld [vmem:[#allocation3] sm:$0xff]
    %v28 = vld [vmem:[%s1] sm:$0x1]
    %v30 = vlaneseq
    %v31 = vshrl.u32 %v30, 7
    %v32 = vsub.s32 0, %v31
    %v33 = vrot.slane %v28, %v32
    %v35 = vmul.f32 %v27, %v33
    %vm36 = vcmask 261120
    %v37 = vsel %vm36, %v35, 0.0
    %38 = vadd.xlane.f32.xlu0 %v37
    %v39 = vpop.xlane.xlu0 %38
    %s40 = sld [smem:[#allocation2]]
    %v41 = vstv %s40
    %v42 = vadd.f32 %v39, %v41
    %v43 = vtanh.pop %v42
    %vm44 = vcmask 7168
    %45 = vst.msk [vmem:[%s3] sm:$0xff] %vm44, %v43
    // Predicated region
    $region18: #{tpu_custom_call.1} parent=1 // pred_check
      _
    $region19: #{tpu_custom_call.1} parent=1 // pred_check_branch
      %47 = sbr.rel (0) target = $region21
    $region20: #{tpu_custom_call.1} parent=1 // pred_region
      _
    $region21: #{tpu_custom_call.1} parent=1 // pred_fallthru
      _
    // Predicated region
    $region22: #{tpu_custom_call.1} parent=1 // pred_check
      _
    $region23: #{tpu_custom_call.1} parent=1 // pred_check_branch
      %49 = sbr.rel (0) target = $region25
    $region24: #{tpu_custom_call.1} parent=1 // pred_region
      _
    $region25: #{tpu_custom_call.1} parent=1 // pred_fallthru
      _
    %50 = vsyncpa [#allocation4], 1

</llo_original>
